<compile_context>
chip_gen: v5e
topology: v5e:2x2
jax: 0.10.0
libtpu: 0.0.40
codegen_flags: <defaults>
</compile_context>

<pallas_src>
import jax
import jax.numpy as jnp
from jax import lax
from jax.experimental import pallas as pl
from jax.experimental.pallas import tpu as pltpu


def _make_polymin_kernel(n_dcoef: int, lr: float, grad_sq_tol: float,
                         max_iter: int, unroll: int):
    """Build the Pallas kernel for fixed derivative length / opt params."""

    def kernel(dcoef_ref, x_init_ref, x_out_ref):
        lr_f = jnp.float32(lr)
        tol = jnp.float32(grad_sq_tol)
        max_it = jnp.int32(max_iter)

        # Hoist every SMEM load out of the hot loop: the derivative
        # coefficients are loop-invariant scalars.
        dcoef = [dcoef_ref[i] for i in range(n_dcoef)]

        def dpoly(x):
            # p'(x) = sum_i d[i] * x^i  via a fully unrolled Horner chain
            # (straight scalar FMA chain, no loop control, no pow).
            g = dcoef[n_dcoef - 1]
            for i in range(n_dcoef - 2, -1, -1):
                g = g * x + dcoef[i]
            return g

        def cond(state):
            _, grad_sq, it = state
            return jnp.logical_and(grad_sq > tol, it < max_it)

        def body(state):
            x, grad_sq, it = state
            # `unroll` guarded SGD steps per while_loop trip.  Each substep is
            # predicated on the exact stopping condition, so results are
            # identical to a one-step-per-iteration loop.
            for _ in range(unroll):
                active = jnp.logical_and(grad_sq > tol, it < max_it)
                g = dpoly(x)                       # gradient at pre-step x
                x = jnp.where(active, x - lr_f * g, x)
                grad_sq = jnp.where(active, g * g, grad_sq)
                it = jnp.where(active, it + jnp.int32(1), it)
            return (x, grad_sq, it)

        x0 = x_init_ref[0]
        # grad_sq starts at +inf -> at least one step is taken (matches the
        # PyTorch `grad_sq = np.inf` initialization).
        init = (x0, jnp.float32(jnp.inf), jnp.int32(0))
        x_fin, _, _ = lax.while_loop(cond, body, init)
        x_out_ref[0] = x_fin

    return kernel


def polymin_layer(poly, x_init, opt_params=None):
    """JAX/Pallas equivalent of PolyMinLayer.forward (SGD optimizer)."""
    opts = dict(optimizer="sgd", lr=0.001, grad_sq_tol=1e-12, max_iter=100,
                verbose=False)
    if opt_params:
        opts.update(opt_params)

    poly = jnp.asarray(poly, jnp.float32)
    assert poly.ndim == 1, "Only one polynomial supported. No batching allowed"
    assert poly.shape[0] > 2, "Polynomial must be of degree at least 2"
    # TODO(synk): only the 'sgd' optimizer branch is implemented in the kernel;
    # 'lbfgs' and 'adam' optimizer state updates are not translated.
    assert opts["optimizer"] == "sgd", "only 'sgd' optimizer is implemented"
    # TODO(synk): a lane-batched (many-polynomial) VPU variant would be the
    # real throughput win, but the module API explicitly forbids batching.

    n_coef = int(poly.shape[0])
    # Precompute derivative coefficients once, outside the hot loop:
    #   p'(x) = sum_{i>=1} i * poly[i] * x^(i-1)  ->  d[j] = (j+1) * poly[j+1]
    dcoef = poly[1:] * jnp.arange(1, n_coef, dtype=jnp.float32)

    x_init_arr = jnp.asarray(x_init, jnp.float32).reshape((1,))

    max_iter = int(opts["max_iter"])
    unroll = max(1, min(8, max_iter))

    kernel = _make_polymin_kernel(
        n_dcoef=n_coef - 1,
        lr=float(opts["lr"]),
        grad_sq_tol=float(opts["grad_sq_tol"]),
        max_iter=max_iter,
        unroll=unroll,
    )

    out = pl.pallas_call(
        kernel,
        out_shape=jax.ShapeDtypeStruct((1,), jnp.float32),
        in_specs=[
            pl.BlockSpec(memory_space=pltpu.SMEM),   # derivative coefficients
            pl.BlockSpec(memory_space=pltpu.SMEM),   # x_init
        ],
        out_specs=pl.BlockSpec(memory_space=pltpu.SMEM),
    )(dcoef, x_init_arr)
    return out[0]


def _polyval_ref(poly, x):
    # pure reference of the polyval used by the module (for sanity only)
    return sum(float(poly[i]) * float(x) ** i for i in range(poly.shape[0]))


def _sgd_ref(poly, x_init, lr, tol, max_iter):
    # pure-Python float32-ish reference of the SGD loop (sanity check only)
    import numpy as np
    p = np.asarray(poly, np.float32)
    d = p[1:] * np.arange(1, p.shape[0], dtype=np.float32)
    x = np.float32(x_init)
    grad_sq = np.float32(np.inf)
    it = 0
    while grad_sq > tol and it < max_iter:
        g = d[-1]
        for i in range(d.shape[0] - 2, -1, -1):
            g = np.float32(g * x + d[i])
        x = np.float32(x - np.float32(lr) * g)
        grad_sq = np.float32(g * g)
        it += 1
    return float(x)


if __name__ == "__main__":
    # Deterministic inputs.
    key = jax.random.PRNGKey(0)
    # Quartic polynomial, lowest degree first:
    #   p(x) = 2 + 0.3 x - 1 x^2 + 0 x^3 + 0.5 x^4   (+ small perturbation)
    base = jnp.array([2.0, 0.3, -1.0, 0.0, 0.5], dtype=jnp.float32)
    noise = 0.01 * jax.random.normal(key, base.shape, dtype=jnp.float32)
    poly = base + noise
    x_init = float(jax.random.uniform(jax.random.PRNGKey(1), (),
                                      minval=0.5, maxval=2.0))

    opt_params = dict(optimizer="sgd", lr=0.01, grad_sq_tol=1e-12,
                      max_iter=500)

    x_min = polymin_layer(poly, x_init, opt_params)
    x_min = jax.block_until_ready(x_min)

    # Sanity checks:
    #  1) result is finite and gradient descent did not increase p(x).
    p_init = _polyval_ref(poly, x_init)
    p_min = _polyval_ref(poly, float(x_min))
    assert jnp.isfinite(x_min)
    assert p_min <= p_init + 1e-5
    #  2) matches a host-side reference of the identical SGD recurrence.
    x_ref = _sgd_ref(poly, x_init, opt_params["lr"],
                     opt_params["grad_sq_tol"], opt_params["max_iter"])
    assert abs(float(x_min) - x_ref) < 1e-2, (float(x_min), x_ref)

    print("KERNEL_OK")
</pallas_src>

<mosaic_0001>
module attributes {stable_mosaic.version = 11 : i64} {
  func.func @kernel(%arg0: memref<4xf32, #tpu.memory_space<smem>>, %arg1: memref<1xf32, #tpu.memory_space<smem>>, %arg2: memref<1xf32, #tpu.memory_space<smem>>) attributes {dimension_semantics = [], scalar_prefetch = 0 : i64, scratch_operands = 0 : i64, tpu.core_type = #tpu.core_type<tc>} {
    %c0 = arith.constant 0 : index
    %0 = memref.load %arg0[%c0] : memref<4xf32, #tpu.memory_space<smem>>
    %c1 = arith.constant 1 : index
    %1 = memref.load %arg0[%c1] : memref<4xf32, #tpu.memory_space<smem>>
    %c2 = arith.constant 2 : index
    %2 = memref.load %arg0[%c2] : memref<4xf32, #tpu.memory_space<smem>>
    %c3 = arith.constant 3 : index
    %3 = memref.load %arg0[%c3] : memref<4xf32, #tpu.memory_space<smem>>
    %c0_0 = arith.constant 0 : index
    %4 = memref.load %arg1[%c0_0] : memref<1xf32, #tpu.memory_space<smem>>
    %cst = arith.constant 9.99999996E-13 : f32
    %c500_i32 = arith.constant 500 : i32
    %cst_1 = arith.constant 9.99999996E-13 : f32
    %c500_i32_2 = arith.constant 500 : i32
    %cst_3 = arith.constant 0.00999999977 : f32
    %cst_4 = arith.constant 0x7F800000 : f32
    %c0_i32 = arith.constant 0 : i32
    %5:3 = scf.while (%arg3 = %4, %arg4 = %cst_4, %arg5 = %c0_i32) : (f32, f32, i32) -> (f32, f32, i32) {
      %7 = arith.cmpf ogt, %arg4, %cst : f32
      %8 = arith.cmpi slt, %arg5, %c500_i32 : i32
      %9 = arith.andi %7, %8 : i1
      scf.condition(%9) %arg3, %arg4, %arg5 : f32, f32, i32
    } do {
    ^bb0(%arg3: f32, %arg4: f32, %arg5: i32):
      %7 = arith.cmpf ogt, %arg4, %cst_1 : f32
      %8 = arith.cmpi slt, %arg5, %c500_i32_2 : i32
      %9 = arith.andi %7, %8 : i1
      %10 = arith.mulf %3, %arg3 : f32
      %11 = arith.addf %10, %2 : f32
      %12 = arith.mulf %11, %arg3 : f32
      %13 = arith.addf %12, %1 : f32
      %14 = arith.mulf %13, %arg3 : f32
      %15 = arith.addf %14, %0 : f32
      %16 = arith.mulf %cst_3, %15 : f32
      %17 = arith.subf %arg3, %16 : f32
      %18 = arith.select %9, %17, %arg3 : f32
      %19 = arith.mulf %15, %15 : f32
      %20 = arith.select %9, %19, %arg4 : f32
      %c1_i32 = arith.constant 1 : i32
      %21 = arith.addi %arg5, %c1_i32 : i32
      %22 = arith.select %9, %21, %arg5 : i32
      %23 = arith.cmpf ogt, %20, %cst_1 : f32
      %24 = arith.cmpi slt, %22, %c500_i32_2 : i32
      %25 = arith.andi %23, %24 : i1
      %26 = arith.mulf %3, %18 : f32
      %27 = arith.addf %26, %2 : f32
      %28 = arith.mulf %27, %18 : f32
      %29 = arith.addf %28, %1 : f32
      %30 = arith.mulf %29, %18 : f32
      %31 = arith.addf %30, %0 : f32
      %32 = arith.mulf %cst_3, %31 : f32
      %33 = arith.subf %18, %32 : f32
      %34 = arith.select %25, %33, %18 : f32
      %35 = arith.mulf %31, %31 : f32
      %36 = arith.select %25, %35, %20 : f32
      %c1_i32_6 = arith.constant 1 : i32
      %37 = arith.addi %22, %c1_i32_6 : i32
      %38 = arith.select %25, %37, %22 : i32
      %39 = arith.cmpf ogt, %36, %cst_1 : f32
      %40 = arith.cmpi slt, %38, %c500_i32_2 : i32
      %41 = arith.andi %39, %40 : i1
      %42 = arith.mulf %3, %34 : f32
      %43 = arith.addf %42, %2 : f32
      %44 = arith.mulf %43, %34 : f32
      %45 = arith.addf %44, %1 : f32
      %46 = arith.mulf %45, %34 : f32
      %47 = arith.addf %46, %0 : f32
      %48 = arith.mulf %cst_3, %47 : f32
      %49 = arith.subf %34, %48 : f32
      %50 = arith.select %41, %49, %34 : f32
      %51 = arith.mulf %47, %47 : f32
      %52 = arith.select %41, %51, %36 : f32
      %c1_i32_7 = arith.constant 1 : i32
      %53 = arith.addi %38, %c1_i32_7 : i32
      %54 = arith.select %41, %53, %38 : i32
      %55 = arith.cmpf ogt, %52, %cst_1 : f32
      %56 = arith.cmpi slt, %54, %c500_i32_2 : i32
      %57 = arith.andi %55, %56 : i1
      %58 = arith.mulf %3, %50 : f32
      %59 = arith.addf %58, %2 : f32
      %60 = arith.mulf %59, %50 : f32
      %61 = arith.addf %60, %1 : f32
      %62 = arith.mulf %61, %50 : f32
      %63 = arith.addf %62, %0 : f32
      %64 = arith.mulf %cst_3, %63 : f32
      %65 = arith.subf %50, %64 : f32
      %66 = arith.select %57, %65, %50 : f32
      %67 = arith.mulf %63, %63 : f32
      %68 = arith.select %57, %67, %52 : f32
      %c1_i32_8 = arith.constant 1 : i32
      %69 = arith.addi %54, %c1_i32_8 : i32
      %70 = arith.select %57, %69, %54 : i32
      %71 = arith.cmpf ogt, %68, %cst_1 : f32
      %72 = arith.cmpi slt, %70, %c500_i32_2 : i32
      %73 = arith.andi %71, %72 : i1
      %74 = arith.mulf %3, %66 : f32
      %75 = arith.addf %74, %2 : f32
      %76 = arith.mulf %75, %66 : f32
      %77 = arith.addf %76, %1 : f32
      %78 = arith.mulf %77, %66 : f32
      %79 = arith.addf %78, %0 : f32
      %80 = arith.mulf %cst_3, %79 : f32
      %81 = arith.subf %66, %80 : f32
      %82 = arith.select %73, %81, %66 : f32
      %83 = arith.mulf %79, %79 : f32
      %84 = arith.select %73, %83, %68 : f32
      %c1_i32_9 = arith.constant 1 : i32
      %85 = arith.addi %70, %c1_i32_9 : i32
      %86 = arith.select %73, %85, %70 : i32
      %87 = arith.cmpf ogt, %84, %cst_1 : f32
      %88 = arith.cmpi slt, %86, %c500_i32_2 : i32
      %89 = arith.andi %87, %88 : i1
      %90 = arith.mulf %3, %82 : f32
      %91 = arith.addf %90, %2 : f32
      %92 = arith.mulf %91, %82 : f32
      %93 = arith.addf %92, %1 : f32
      %94 = arith.mulf %93, %82 : f32
      %95 = arith.addf %94, %0 : f32
      %96 = arith.mulf %cst_3, %95 : f32
      %97 = arith.subf %82, %96 : f32
      %98 = arith.select %89, %97, %82 : f32
      %99 = arith.mulf %95, %95 : f32
      %100 = arith.select %89, %99, %84 : f32
      %c1_i32_10 = arith.constant 1 : i32
      %101 = arith.addi %86, %c1_i32_10 : i32
      %102 = arith.select %89, %101, %86 : i32
      %103 = arith.cmpf ogt, %100, %cst_1 : f32
      %104 = arith.cmpi slt, %102, %c500_i32_2 : i32
      %105 = arith.andi %103, %104 : i1
      %106 = arith.mulf %3, %98 : f32
      %107 = arith.addf %106, %2 : f32
      %108 = arith.mulf %107, %98 : f32
      %109 = arith.addf %108, %1 : f32
      %110 = arith.mulf %109, %98 : f32
      %111 = arith.addf %110, %0 : f32
      %112 = arith.mulf %cst_3, %111 : f32
      %113 = arith.subf %98, %112 : f32
      %114 = arith.select %105, %113, %98 : f32
      %115 = arith.mulf %111, %111 : f32
      %116 = arith.select %105, %115, %100 : f32
      %c1_i32_11 = arith.constant 1 : i32
      %117 = arith.addi %102, %c1_i32_11 : i32
      %118 = arith.select %105, %117, %102 : i32
      %119 = arith.cmpf ogt, %116, %cst_1 : f32
      %120 = arith.cmpi slt, %118, %c500_i32_2 : i32
      %121 = arith.andi %119, %120 : i1
      %122 = arith.mulf %3, %114 : f32
      %123 = arith.addf %122, %2 : f32
      %124 = arith.mulf %123, %114 : f32
      %125 = arith.addf %124, %1 : f32
      %126 = arith.mulf %125, %114 : f32
      %127 = arith.addf %126, %0 : f32
      %128 = arith.mulf %cst_3, %127 : f32
      %129 = arith.subf %114, %128 : f32
      %130 = arith.select %121, %129, %114 : f32
      %131 = arith.mulf %127, %127 : f32
      %132 = arith.select %121, %131, %116 : f32
      %c1_i32_12 = arith.constant 1 : i32
      %133 = arith.addi %118, %c1_i32_12 : i32
      %134 = arith.select %121, %133, %118 : i32
      scf.yield %130, %132, %134 : f32, f32, i32
    }
    %c0_5 = arith.constant 0 : index
    %6 = memref.load %arg2[%c0_5] : memref<1xf32, #tpu.memory_space<smem>>
    memref.store %5#0, %arg2[%c0_5] : memref<1xf32, #tpu.memory_space<smem>>
    return
  }
}

</mosaic_0001>

<llo_original>
// kernel: tpu_custom_call.1
$region0: #{tpu_custom_call.1}
  #allocation0 [shape = 'u32[]', space=smem, size = 0x4, offset = 0x4, fixed_abs, tag = 'smem constant byte address 0x4 - core index']
  #allocation1 [shape = 'u32[72,128]{1,0:T(1,128)}', space=vmem, size = 0x9000, scoped, tag = 'internal scratch']
  #allocation2 [shape = 'f32[1]{0:T(128)S(6)}', space=smem, size = 0x200, scoped, tag = 'scoped memory for tpu_custom_call.1']
  %s0 = inlined_call_operand.vmem [shape: f32[4], index: 0, kind: input, shape index: {}]
  %s1 = inlined_call_operand.<no memory space> [shape: f32[1], index: 1, kind: input, shape index: {}]
  %s2 = inlined_call_operand.hbm [shape: f32[1], index: 2, kind: output, shape index: {}]
  %s3 = sld [smem:[#allocation0]]
  $region29: #{tpu_custom_call.1} parent=0
    _
  %s5 = ssub.s32 1, %s3
  %s6 = scalar_select 0, %s5, %s3
  %7 = sst [smem:[#allocation2]] %s1
  $region1: #{tpu_custom_call.1} parent=0
    #allocation3 [shape = 'u8[512]{0}', space=smem, size = 0x200, scoped, tag = 'input window, operand 0, single buffered']
    #allocation4 [shape = 's32[1]{0}', space=sflag, size = 0x4, scoped, tag = 'scoped memory for tpu_custom_call.1']
    #allocation5 [shape = 's32[1]{0}', space=sflag, size = 0x4, scoped, tag = 'scoped memory for tpu_custom_call.1']
    #allocation6 [shape = 'u8[512]{0}', space=smem, size = 0x200, scoped, tag = 'output window, operand 0, single buffered']
    %8 = vsyncpa [#allocation5], 0
    %9 = vsyncpa [#allocation4], 0
    // Predicated region
    $region2: #{tpu_custom_call.1} parent=1 // pred_check
      _
    $region3: #{tpu_custom_call.1} parent=1 // pred_check_branch
      %11 = sbr.rel (0) target = $region5
    $region4: #{tpu_custom_call.1} parent=1 // pred_region
      %13 = vsyncadd [#allocation5], 0
      %s15 = sshll.u32 %s0, 4
      %s16 = int_to_ptr.vmem [resolvable:$true] %s15
      %18 = dma.vmem_to_smem %s16, 16, [#allocation3], [#allocation5]
    $region5: #{tpu_custom_call.1} parent=1 // pred_fallthru
      _
    // Predicated region
    $region6: #{tpu_custom_call.1} parent=1 // pred_check
      _
    $region7: #{tpu_custom_call.1} parent=1 // pred_check_branch
      %20 = sbr.rel (0) target = $region9
    $region8: #{tpu_custom_call.1} parent=1 // pred_region
      _
    $region9: #{tpu_custom_call.1} parent=1 // pred_fallthru
      _
    // Predicated region
    $region10: #{tpu_custom_call.1} parent=1 // pred_check
      _
    $region11: #{tpu_custom_call.1} parent=1 // pred_check_branch
      %22 = sbr.rel (0) target = $region13
    $region12: #{tpu_custom_call.1} parent=1 // pred_region
      %24 = dma.done [#allocation5], 16
    $region13: #{tpu_custom_call.1} parent=1 // pred_fallthru
      _
    %25 = sfence
    %s26 = sld [smem:[#allocation3]]
    %s27 = sld [smem:[#allocation3 + $0x1]]
    %s28 = sld [smem:[#allocation3 + $0x2]]
    %s29 = sld [smem:[#allocation3 + $0x3]]
    %s30 = sld [smem:[#allocation2]]
    // While loop
    $region14: #{tpu_custom_call.1} parent=1 // loop_pre_header
      _
    $region15: #{tpu_custom_call.1} parent=1 // loop_header
      %s32 = sphi %s30, %s172
      %s33 = sphi inf, %s174
      %s34 = sphi 0, %s176
      %p35 = scmp.gt.f32.partialorder %s33, 1e-12
      %p36 = scmp.lt.s32.totalorder %s34, 500
      %p37 = pnand %p35, %p36
      %p38 = pneg %p37
    $region16: #{tpu_custom_call.1} parent=1 // loop_header_branch
      %40 = sbr.rel (%p37) target = $region20
    $region17: #{tpu_custom_call.1} parent=1 // loop_body
      %p41 = scmp.gt.f32.partialorder %s33, 1e-12
      %p42 = scmp.lt.s32.totalorder %s34, 500
      %p43 = pnand %p41, %p42
      %p44 = pneg %p43
      %s45 = smul.f32 %s29, %s32
      %s46 = sadd.f32 %s45, %s28
      %s47 = smul.f32 %s46, %s32
      %s48 = sadd.f32 %s47, %s27
      %s49 = smul.f32 %s48, %s32
      %s50 = sadd.f32 %s49, %s26
      %s51 = smul.f32 %s50, 0.01
      %s52 = ssub.f32 %s32, %s51
      %s53 = scalar_select %p44, %s52, %s32
      %s54 = smul.f32 %s50, %s50
      %s55 = scalar_select %p44, %s54, %s33
      %s56 = sadd.s32 %s34, 1
      %s57 = scalar_select %p44, %s56, %s34
      %p58 = scmp.gt.f32.partialorder %s55, 1e-12
      %p59 = scmp.lt.s32.totalorder %s57, 500
      %p60 = pnand %p58, %p59
      %p61 = pneg %p60
      %s62 = smul.f32 %s29, %s53
      %s63 = sadd.f32 %s62, %s28
      %s64 = smul.f32 %s63, %s53
      %s65 = sadd.f32 %s64, %s27
      %s66 = smul.f32 %s65, %s53
      %s67 = sadd.f32 %s66, %s26
      %s68 = smul.f32 %s67, 0.01
      %s69 = ssub.f32 %s53, %s68
      %s70 = scalar_select %p61, %s69, %s53
      %s71 = smul.f32 %s67, %s67
      %s72 = scalar_select %p61, %s71, %s55
      %s73 = sadd.s32 %s57, 1
      %s74 = scalar_select %p61, %s73, %s57
      %p75 = scmp.gt.f32.partialorder %s72, 1e-12
      %p76 = scmp.lt.s32.totalorder %s74, 500
      %p77 = pnand %p75, %p76
      %p78 = pneg %p77
      %s79 = smul.f32 %s29, %s70
      %s80 = sadd.f32 %s79, %s28
      %s81 = smul.f32 %s80, %s70
      %s82 = sadd.f32 %s81, %s27
      %s83 = smul.f32 %s82, %s70
      %s84 = sadd.f32 %s83, %s26
      %s85 = smul.f32 %s84, 0.01
      %s86 = ssub.f32 %s70, %s85
      %s87 = scalar_select %p78, %s86, %s70
      %s88 = smul.f32 %s84, %s84
      %s89 = scalar_select %p78, %s88, %s72
      %s90 = sadd.s32 %s74, 1
      %s91 = scalar_select %p78, %s90, %s74
      %p92 = scmp.gt.f32.partialorder %s89, 1e-12
      %p93 = scmp.lt.s32.totalorder %s91, 500
      %p94 = pnand %p92, %p93
      %p95 = pneg %p94
      %s96 = smul.f32 %s29, %s87
      %s97 = sadd.f32 %s96, %s28
      %s98 = smul.f32 %s97, %s87
      %s99 = sadd.f32 %s98, %s27
      %s100 = smul.f32 %s99, %s87
      %s101 = sadd.f32 %s100, %s26
      %s102 = smul.f32 %s101, 0.01
      %s103 = ssub.f32 %s87, %s102
      %s104 = scalar_select %p95, %s103, %s87
      %s105 = smul.f32 %s101, %s101
      %s106 = scalar_select %p95, %s105, %s89
      %s107 = sadd.s32 %s91, 1
      %s108 = scalar_select %p95, %s107, %s91
      %p109 = scmp.gt.f32.partialorder %s106, 1e-12
      %p110 = scmp.lt.s32.totalorder %s108, 500
      %p111 = pnand %p109, %p110
      %p112 = pneg %p111
      %s113 = smul.f32 %s29, %s104
      %s114 = sadd.f32 %s113, %s28
      %s115 = smul.f32 %s114, %s104
      %s116 = sadd.f32 %s115, %s27
      %s117 = smul.f32 %s116, %s104
      %s118 = sadd.f32 %s117, %s26
      %s119 = smul.f32 %s118, 0.01
      %s120 = ssub.f32 %s104, %s119
      %s121 = scalar_select %p112, %s120, %s104
      %s122 = smul.f32 %s118, %s118
      %s123 = scalar_select %p112, %s122, %s106
      %s124 = sadd.s32 %s108, 1
      %s125 = scalar_select %p112, %s124, %s108
      %p126 = scmp.gt.f32.partialorder %s123, 1e-12
      %p127 = scmp.lt.s32.totalorder %s125, 500
      %p128 = pnand %p126, %p127
      %p129 = pneg %p128
      %s130 = smul.f32 %s29, %s121
      %s131 = sadd.f32 %s130, %s28
      %s132 = smul.f32 %s131, %s121
      %s133 = sadd.f32 %s132, %s27
      %s134 = smul.f32 %s133, %s121
      %s135 = sadd.f32 %s134, %s26
      %s136 = smul.f32 %s135, 0.01
      %s137 = ssub.f32 %s121, %s136
      %s138 = scalar_select %p129, %s137, %s121
      %s139 = smul.f32 %s135, %s135
      %s140 = scalar_select %p129, %s139, %s123
      %s141 = sadd.s32 %s125, 1
      %s142 = scalar_select %p129, %s141, %s125
      %p143 = scmp.gt.f32.partialorder %s140, 1e-12
      %p144 = scmp.lt.s32.totalorder %s142, 500
      %p145 = pnand %p143, %p144
      %p146 = pneg %p145
      %s147 = smul.f32 %s29, %s138
      %s148 = sadd.f32 %s147, %s28
      %s149 = smul.f32 %s148, %s138
      %s150 = sadd.f32 %s149, %s27
      %s151 = smul.f32 %s150, %s138
      %s152 = sadd.f32 %s151, %s26
      %s153 = smul.f32 %s152, 0.01
      %s154 = ssub.f32 %s138, %s153
      %s155 = scalar_select %p146, %s154, %s138
      %s156 = smul.f32 %s152, %s152
      %s157 = scalar_select %p146, %s156, %s140
      %s158 = sadd.s32 %s142, 1
      %s159 = scalar_select %p146, %s158, %s142
      %p160 = scmp.gt.f32.partialorder %s157, 1e-12
      %p161 = scmp.lt.s32.totalorder %s159, 500
      %p162 = pnand %p160, %p161
      %p163 = pneg %p162
      %s164 = smul.f32 %s29, %s155
      %s165 = sadd.f32 %s164, %s28
      %s166 = smul.f32 %s165, %s155
      %s167 = sadd.f32 %s166, %s27
      %s168 = smul.f32 %s167, %s155
      %s169 = sadd.f32 %s168, %s26
      %s170 = smul.f32 %s169, 0.01
      %s171 = ssub.f32 %s155, %s170
      %s172 = scalar_select %p163, %s171, %s155
      %s173 = smul.f32 %s169, %s169
      %s174 = scalar_select %p163, %s173, %s157
      %s175 = sadd.s32 %s159, 1
      %s176 = scalar_select %p163, %s175, %s159
    $region18: #{tpu_custom_call.1} parent=1 // loop_footer
      _
    $region19: #{tpu_custom_call.1} parent=1 // loop_footer_branch
      %31 = sbr.rel target = $region15
    $region20: #{tpu_custom_call.1} parent=1 // loop_exit
      _
    %s177 = scalar_lea.smem [#allocation6], 0
    %178 = sst [smem:[%s177]] %s32
    // Predicated region
    $region21: #{tpu_custom_call.1} parent=1 // pred_check
      _
    $region22: #{tpu_custom_call.1} parent=1 // pred_check_branch
      %180 = sbr.rel (0) target = $region24
    $region23: #{tpu_custom_call.1} parent=1 // pred_region
      %182 = vsyncadd [#allocation4], 0
      %s184 = sshll.u32 %s2, 4
      %s185 = int_to_ptr.hbm [resolvable:$true] %s184
      %187 = dma.smem_to_hbm [#allocation6], 16, %s185, [#allocation4]
    $region24: #{tpu_custom_call.1} parent=1 // pred_fallthru
      _
    // Predicated region
    $region25: #{tpu_custom_call.1} parent=1 // pred_check
      _
    $region26: #{tpu_custom_call.1} parent=1 // pred_check_branch
      %189 = sbr.rel (0) target = $region28
    $region27: #{tpu_custom_call.1} parent=1 // pred_region
      %191 = dma.done [#allocation4], 16
    $region28: #{tpu_custom_call.1} parent=1 // pred_fallthru
      _
    %192 = sfence
    %193 = vsyncpa [#allocation4], 1
    %194 = vsyncpa [#allocation5], 1

</llo_original>
